<compile_context>
chip_gen: v6e
topology: v6e:2x2x1
jax: 0.10.0
libtpu: 0.0.40
codegen_flags: <defaults>
</compile_context>

<pallas_src>
import jax
import jax.numpy as jnp
from jax import lax
from jax.experimental import pallas as pl
from jax.experimental.pallas import tpu as pltpu


def _round_up(n, m):
    return ((n + m - 1) // m) * m


def _regression_head_kernel(x_ref, w_ref, b_ref, o_ref):
    # x_ref: [TB, H] VMEM (double-buffered per grid step)
    # w_ref: [1, H]  VMEM (resident across steps -- constant index_map)
    # b_ref: [1]     SMEM scalar
    # o_ref: [TB, 1] VMEM output block (masked writeback on the ragged tile)
    x = x_ref[...].astype(jnp.float32)
    w = w_ref[...].astype(jnp.float32)
    b = b_ref[0]
    # VPU broadcast multiply, then a last-axis reduction (VALU adds across the
    # H/128 lane groups + one cross-lane XLU reduce).  No MXU, no re-layout
    # of the [TB, H] tile.
    y = jnp.sum(x * w, axis=1, keepdims=True)  # [TB, 1] f32
    o_ref[...] = (y + b).astype(o_ref.dtype)


def regression_head(x, weight, bias):
    """Forward pass of RegressionHead (nn.Linear(hid_dim, 1)).

    x:      [batch, hid_dim]  float32
    weight: [1, hid_dim]      float32  (PyTorch nn.Linear weight layout)
    bias:   [1]               float32
    returns [batch, 1]        float32
    """
    B, H = x.shape
    itemsize = x.dtype.itemsize

    if B <= 128:
        # Single tile; block == full array dims (always a legal block shape).
        TB = B
    else:
        # Batch tile: multiple of 128, sized so the double-buffered x tile
        # (2 * TB * H * itemsize) stays within ~24 MiB.
        vmem_tile_budget = 24 * 1024 * 1024
        tb_cap = max(128, (vmem_tile_budget // (2 * H * itemsize)) // 128 * 128)
        TB = min(tb_cap, _round_up(B, 128))
        # Keep >= 2 tiles so both TensorCores get work on v7x (neutral on
        # single-TC v5e / v6e).
        TB = min(TB, max(128, _round_up(pl.cdiv(B, 2), 128)))

    num_tiles = pl.cdiv(B, TB)

    # Explicit VMEM limit: double-buffered x tiles + double-buffered weight +
    # double-buffered output block + headroom.  Needed for v5e's 16 MiB
    # scoped default; kept well under v7x's 64 MiB physical VMEM.
    vmem_need = 2 * TB * H * itemsize + 2 * H * itemsize + 2 * TB * itemsize
    vmem_limit = int(min(56 * 1024 * 1024,
                         max(vmem_need + 4 * 1024 * 1024, 16 * 1024 * 1024)))

    out = pl.pallas_call(
        _regression_head_kernel,
        out_shape=jax.ShapeDtypeStruct((B, 1), x.dtype),
        grid_spec=pltpu.PrefetchScalarGridSpec(
            num_scalar_prefetch=0,
            grid=(num_tiles,),
            in_specs=[
                # x: one batch tile per grid step (double-buffered by Pallas;
                # ragged last tile handled with padded read).
                pl.BlockSpec((TB, H), lambda i: (i, 0)),
                # weight: lane-dense [1, H], constant index_map -> resident.
                pl.BlockSpec((1, H), lambda i: (0, 0)),
                # bias: scalar in SMEM.
                pl.BlockSpec(memory_space=pltpu.MemorySpace.SMEM),
            ],
            # natural [TB, 1] output block; ragged tile writeback is masked.
            out_specs=pl.BlockSpec((TB, 1), lambda i: (i, 0)),
        ),
        compiler_params=pltpu.CompilerParams(
            dimension_semantics=("parallel",),
            vmem_limit_bytes=vmem_limit,
        ),
    )(x, weight, bias)

    return out


def _reference(x, weight, bias):
    # Same semantics as PyTorch nn.Linear(hid_dim, 1); HIGHEST precision so the
    # f32 reference is not degraded by TPU default-matmul precision.
    return jnp.dot(x, weight.T, precision=lax.Precision.HIGHEST) + bias


if __name__ == "__main__":
    key = jax.random.PRNGKey(0)

    # Case 1: small shapes consistent with the module (single tile path).
    k1, k2, k3, k4 = jax.random.split(key, 4)
    batch, hid_dim = 8, 32
    x = jax.random.normal(k1, (batch, hid_dim), dtype=jnp.float32)
    weight = jax.random.normal(k2, (1, hid_dim), dtype=jnp.float32) * 0.1
    bias = jax.random.normal(k3, (1,), dtype=jnp.float32) * 0.1

    y = jax.block_until_ready(regression_head(x, weight, bias))
    y_ref = _reference(x, weight, bias)
    assert y.shape == (batch, 1)
    assert jnp.allclose(y, y_ref, atol=1e-5, rtol=1e-5)

    # Case 2: batch not a multiple of the tile size -> exercises the ragged
    # last tile (padded read / masked writeback) and the multi-tile path.
    batch2, hid_dim2 = 300, 256
    x2 = jax.random.normal(k4, (batch2, hid_dim2), dtype=jnp.float32)
    w2 = jax.random.normal(k2, (1, hid_dim2), dtype=jnp.float32) * 0.05
    b2 = jax.random.normal(k3, (1,), dtype=jnp.float32) * 0.1

    y2 = jax.block_until_ready(regression_head(x2, w2, b2))
    y2_ref = _reference(x2, w2, b2)
    assert y2.shape == (batch2, 1)
    assert jnp.allclose(y2, y2_ref, atol=1e-5, rtol=1e-5)

    print("KERNEL_OK")
</pallas_src>

<mosaic_0001>
module attributes {stable_mosaic.version = 11 : i64} {
  func.func @_regression_head_kernel(%arg0: i32, %arg1: memref<8x32xf32, #tpu.memory_space<vmem>>, %arg2: memref<1x32xf32, #tpu.memory_space<vmem>>, %arg3: memref<1xf32, #tpu.memory_space<smem>>, %arg4: memref<8x1xf32, #tpu.memory_space<vmem>>) attributes {dimension_semantics = [#tpu.dimension_semantics<parallel>], iteration_bounds = array<i64: 1>, scalar_prefetch = 0 : i64, scratch_operands = 0 : i64, tpu.core_type = #tpu.core_type<tc>, window_params = [{transform_indices = @transform_0, window_bounds = array<i64: 8, 32>}, {pipeline_mode = #tpu.pipeline_mode<synchronous>, transform_indices = @transform_1, window_bounds = array<i64: 1, 32>}, {transform_indices = @transform_2, window_bounds = array<i64: 1>}, {transform_indices = @transform_3, window_bounds = array<i64: 8, 1>}]} {
    %c0 = arith.constant 0 : index
    %c0_0 = arith.constant 0 : index
    %0 = vector.load %arg1[%c0, %c0_0] : memref<8x32xf32, #tpu.memory_space<vmem>>, vector<8x32xf32>
    %c0_1 = arith.constant 0 : index
    %c0_2 = arith.constant 0 : index
    %1 = vector.load %arg2[%c0_1, %c0_2] : memref<1x32xf32, #tpu.memory_space<vmem>>, vector<1x32xf32>
    %c0_3 = arith.constant 0 : index
    %2 = memref.load %arg3[%c0_3] : memref<1xf32, #tpu.memory_space<smem>>
    %3 = vector.broadcast %1 : vector<1x32xf32> to vector<8x32xf32>
    %4 = arith.mulf %0, %3 : vector<8x32xf32>
    %cst = arith.constant dense<0.000000e+00> : vector<8xf32>
    %5 = vector.multi_reduction <add>, %4, %cst [1] : vector<8x32xf32> to vector<8xf32>
    %6 = vector.shape_cast %5 : vector<8xf32> to vector<8x1xf32>
    %7 = vector.broadcast %2 : f32 to vector<8x1xf32>
    %8 = arith.addf %6, %7 : vector<8x1xf32>
    %c0_4 = arith.constant 0 : index
    %c0_5 = arith.constant 0 : index
    %9 = vector.load %arg4[%c0_4, %c0_5] : memref<8x1xf32, #tpu.memory_space<vmem>>, vector<8x1xf32>
    tpu.vector_store %arg4[%c0_4, %c0_5], %8 {strides = array<i32>} : memref<8x1xf32, #tpu.memory_space<vmem>>, vector<8x1xf32>,
    return
  }
  func.func @transform_0(%arg0: i32) -> (i32, i32) {
    %c0_i32 = arith.constant 0 : i32
    %c0_i32_0 = arith.constant 0 : i32
    return %arg0, %c0_i32 : i32, i32
  }
  func.func @transform_1(%arg0: i32) -> (i32, i32) {
    %c0_i32 = arith.constant 0 : i32
    %c0_i32_0 = arith.constant 0 : i32
    %c0_i32_1 = arith.constant 0 : i32
    return %c0_i32, %c0_i32_0 : i32, i32
  }
  func.func @transform_2(%arg0: i32) -> i32 {
    %c0_i32 = arith.constant 0 : i32
    %c0_i32_0 = arith.constant 0 : i32
    return %c0_i32 : i32
  }
  func.func @transform_3(%arg0: i32) -> (i32, i32) {
    %c0_i32 = arith.constant 0 : i32
    %c0_i32_0 = arith.constant 0 : i32
    return %arg0, %c0_i32 : i32, i32
  }
}

</mosaic_0001>

<llo_original>
// kernel: tpu_custom_call.1
$region0: #{tpu_custom_call.1}
  #allocation0 [shape = 'u32[]', space=smem, size = 0x4, offset = 0x4, fixed_abs, tag = 'smem constant byte address 0x4 - core index']
  #allocation1 [shape = 'u32[144,128]{1,0:T(1,128)}', space=vmem, size = 0x12000, scoped, tag = 'internal scratch']
  #allocation2 [shape = 'f32[1]{0:T(128)S(6)}', space=smem, size = 0x200, scoped, tag = 'scoped memory for tpu_custom_call.1']
  %s0 = inlined_call_operand.hbm [shape: f32[8,32], index: 0, kind: input, shape index: {}]
  %s1 = inlined_call_operand.vmem [shape: f32[1,32], index: 1, kind: input, shape index: {}]
  %s2 = inlined_call_operand.<no memory space> [shape: f32[1], index: 2, kind: input, shape index: {}]
  %s3 = inlined_call_operand.vmem [shape: f32[8,1], index: 3, kind: output, shape index: {}]
  %s4 = sld [smem:[#allocation0]]
  $region26: #{tpu_custom_call.1} parent=0
    _
  %s6 = ssub.s32 1, %s4
  %s7 = scalar_select 0, %s6, %s4
  %8 = sst [smem:[#allocation2]] %s2
  $region1: #{tpu_custom_call.1} parent=0
    #allocation3 [shape = 'u8[4096]{0}', space=vmem, size = 0x1000, scoped, tag = 'input window, operand 0, single buffered']
    #allocation4 [shape = 's32[1]{0}', space=sflag, size = 0x4, scoped, tag = 'scoped memory for tpu_custom_call.1']
    %9 = vsyncpa [#allocation4], 0
    // Predicated region
    $region2: #{tpu_custom_call.1} parent=1 // pred_check
      _
    $region3: #{tpu_custom_call.1} parent=1 // pred_check_branch
      %11 = sbr.rel (0) target = $region5
    $region4: #{tpu_custom_call.1} parent=1 // pred_region
      %s13 = ssub.s32 128, 128
      %14 = vsyncadd [#allocation4], %s13
      %s16 = sshll.u32 [#allocation3], 4
      %s17 = int_to_ptr.vmem [resolvable:$true] %s16
      %19 = dma.hbm_to_vmem [thread:$0]  %s0, 128, %s17, [#allocation4]
    $region5: #{tpu_custom_call.1} parent=1 // pred_fallthru
      _
    // Predicated region
    $region6: #{tpu_custom_call.1} parent=1 // pred_check
      _
    $region7: #{tpu_custom_call.1} parent=1 // pred_check_branch
      %21 = sbr.rel (0) target = $region9
    $region8: #{tpu_custom_call.1} parent=1 // pred_region
      _
    $region9: #{tpu_custom_call.1} parent=1 // pred_fallthru
      _
    // Predicated region
    $region10: #{tpu_custom_call.1} parent=1 // pred_check
      _
    $region11: #{tpu_custom_call.1} parent=1 // pred_check_branch
      %23 = sbr.rel (0) target = $region13
    $region12: #{tpu_custom_call.1} parent=1 // pred_region
      _
    $region13: #{tpu_custom_call.1} parent=1 // pred_fallthru
      _
    // Predicated region
    $region14: #{tpu_custom_call.1} parent=1 // pred_check
      _
    $region15: #{tpu_custom_call.1} parent=1 // pred_check_branch
      %25 = sbr.rel (0) target = $region17
    $region16: #{tpu_custom_call.1} parent=1 // pred_region
      %26 = dma.done [#allocation4], 128
    $region17: #{tpu_custom_call.1} parent=1 // pred_fallthru
      _
    %v27 = vld [vmem:[#allocation3] sm:$0xff]
    %v28 = vld [vmem:[%s1] sm:$0x1]
    %s29 = sld [smem:[#allocation2]]
    %v31 = vlaneseq
    %v32 = vshrl.u32 %v31, 7
    %v33 = vsub.s32 0, %v32
    %v34 = vrot.slane %v28, %v33
    %v36 = vmul.f32 %v27, %v34
    %vm37 = vcmask 261120
    %v38 = vsel %vm37, %v36, 0.0
    %39 = vadd.xlane.f32.xlu0 %v38
    %v40 = vpop.xlane.xlu0 %39
    %v41 = vstv %s29
    %v42 = vadd.f32 %v40, %v41
    %vm43 = vcmask 7168
    %44 = vst.msk [vmem:[%s3] sm:$0xff] %vm43, %v42
    // Predicated region
    $region18: #{tpu_custom_call.1} parent=1 // pred_check
      _
    $region19: #{tpu_custom_call.1} parent=1 // pred_check_branch
      %46 = sbr.rel (0) target = $region21
    $region20: #{tpu_custom_call.1} parent=1 // pred_region
      _
    $region21: #{tpu_custom_call.1} parent=1 // pred_fallthru
      _
    // Predicated region
    $region22: #{tpu_custom_call.1} parent=1 // pred_check
      _
    $region23: #{tpu_custom_call.1} parent=1 // pred_check_branch
      %48 = sbr.rel (0) target = $region25
    $region24: #{tpu_custom_call.1} parent=1 // pred_region
      _
    $region25: #{tpu_custom_call.1} parent=1 // pred_fallthru
      _
    %49 = vsyncpa [#allocation4], 1

</llo_original>
